<compile_context>
chip_gen: v7x
topology: tpu7x:2x2x1
jax: 0.10.0
libtpu: 0.0.40
codegen_flags: <defaults>
</compile_context>

<pallas_src>
import jax
import jax.numpy as jnp
from jax.experimental import pallas as pl
from jax.experimental.pallas import tpu as pltpu

# ----------------------------- small config ---------------------------------
B = 2            # batch
N_HEAD = 4       # query heads
N_KV = 2         # key heads (GQA-style; RoPE applies to both regardless)
T = 16           # sequence length
DIM = 128        # rotary / head dim (must be even; 128 -> lane-dense)
MAX_SEQ_LEN = 32


# ----------------------------- Pallas kernel --------------------------------
def rope_kernel(q_ref, k_ref, cos_ref, sin_ref, qo_ref, ko_ref):
    """q_ref: (H, Tt, D); k_ref: (G, Tt, D); cos/sin: (Tt, D); sin is sign-folded."""
    cos = cos_ref[...]                     # (Tt, D) in compute dtype
    sin = sin_ref[...]                     # (Tt, D), already * ([-1]*D/2 ++ [+1]*D/2)

    def apply(x_ref, o_ref):
        x = x_ref[...].astype(cos.dtype)   # (N, Tt, D)
        # rotate_half(x) * sin == roll(x, D//2 along lanes) * sin_signed
        xr = pltpu.roll(x, shift=x.shape[-1] // 2, axis=2)
        o_ref[...] = (x * cos[None, :, :] + xr * sin[None, :, :]).astype(o_ref.dtype)

    apply(q_ref, qo_ref)
    apply(k_ref, ko_ref)


def _choose_t_tile(T, H, G, D, itemsize, tile_budget_bytes):
    """Largest T tile (full T, or a multiple of 8 dividing T) whose
    double-buffered in+out q/k working set fits the per-step VMEM budget."""
    per_row = 2 * 2 * (H + G) * D * itemsize   # dbl-buffer * (in+out) * all heads
    if T <= 8 or T * per_row <= tile_budget_bytes:
        return T
    cands = [t for t in range(8, T, 8) if T % t == 0]
    for t in reversed(cands):
        if t * per_row <= tile_budget_bytes:
            return t
    return cands[0] if cands else T


def apply_rope(q, k, cos, sin, *, compute_dtype=None, tile_budget_bytes=16 << 20):
    """RoPE forward. q:(B,H,T,D), k:(B,G,T,D), cos/sin: standard (>=T, D) tables."""
    Bq, H, Tq, D = q.shape
    G = k.shape[1]
    assert D % 2 == 0, "RoPE dim must be even"

    if compute_dtype is None:
        # bf16 compute + IO when inputs are bf16 (v6e/v7x); f32 otherwise.
        # TODO(synk): force float32 here on v5e (no bf16 VALU/EUP on that chip).
        compute_dtype = jnp.bfloat16 if q.dtype == jnp.bfloat16 else jnp.float32

    # Fold rotate_half's sign pattern (-1 on first half, +1 on second) into sin
    # here, so the public API takes the standard tables and the kernel only
    # needs one XLU roll + two VPU muls + one add per element.
    sign = jnp.concatenate([-jnp.ones((D // 2,), compute_dtype),
                            jnp.ones((D // 2,), compute_dtype)])
    cos_c = cos[:Tq].astype(compute_dtype)
    sin_c = sin[:Tq].astype(compute_dtype) * sign[None, :]

    itemsize = max(jnp.dtype(compute_dtype).itemsize, jnp.dtype(q.dtype).itemsize)
    t_tile = _choose_t_tile(Tq, H, G, D, itemsize, tile_budget_bytes)
    grid = (Bq, Tq // t_tile)

    # Scoped-VMEM request: double-buffered in+out q/k tiles + cos/sin tiles,
    # with 2x headroom, clamped to [32 MiB, 64 MiB] (valid on v5e/v6e/v7x).
    tile_bytes = 2 * 2 * (H + G) * t_tile * D * itemsize
    tile_bytes += 2 * 2 * t_tile * D * jnp.dtype(compute_dtype).itemsize
    vmem_limit = int(min(max(2 * tile_bytes, 32 << 20), 64 << 20))

    elems = Bq * (H + G) * Tq * D
    cost = pl.CostEstimate(
        flops=3 * elems,                     # 2 mul + 1 add per element of q and k
        transcendentals=0,
        bytes_accessed=2 * elems * jnp.dtype(q.dtype).itemsize
        + 2 * Tq * D * jnp.dtype(compute_dtype).itemsize,
    )

    return pl.pallas_call(
        rope_kernel,
        out_shape=(jax.ShapeDtypeStruct(q.shape, q.dtype),
                   jax.ShapeDtypeStruct(k.shape, k.dtype)),
        grid=grid,
        in_specs=[
            pl.BlockSpec((None, H, t_tile, D), lambda b, t: (b, 0, t, 0)),
            pl.BlockSpec((None, G, t_tile, D), lambda b, t: (b, 0, t, 0)),
            pl.BlockSpec((t_tile, D), lambda b, t: (t, 0)),
            pl.BlockSpec((t_tile, D), lambda b, t: (t, 0)),
        ],
        out_specs=(pl.BlockSpec((None, H, t_tile, D), lambda b, t: (b, 0, t, 0)),
                   pl.BlockSpec((None, G, t_tile, D), lambda b, t: (b, 0, t, 0))),
        input_output_aliases={0: 0, 1: 1},   # in-place RoPE: q->q_rot, k->k_rot
        cost_estimate=cost,
        compiler_params=pltpu.CompilerParams(
            dimension_semantics=("parallel", "parallel"),
            vmem_limit_bytes=vmem_limit),
    )(q, k, cos_c, sin_c)


# ----------------------------- RoPE tables (matches the PyTorch buffers) -----
def rope_tables(max_seq_len, dim):
    inv_freq = 1.0 / (10000.0 ** (jnp.arange(0, dim, 2, dtype=jnp.float32) / dim))
    t = jnp.arange(max_seq_len, dtype=jnp.float32)
    freqs = jnp.outer(t, inv_freq)                     # (max_seq, dim/2)
    emb = jnp.concatenate([freqs, freqs], axis=-1)     # (max_seq, dim)
    return jnp.cos(emb), jnp.sin(emb)


# ----------------------------- pure-JAX reference ----------------------------
def reference_rope(q, k, cos, sin):
    def rotate_half(x):
        h = x.shape[-1] // 2
        return jnp.concatenate([-x[..., h:], x[..., :h]], axis=-1)
    c, s = cos[None, None], sin[None, None]
    return q * c + rotate_half(q) * s, k * c + rotate_half(k) * s


# ----------------------------- main ------------------------------------------
if __name__ == "__main__":
    key = jax.random.PRNGKey(0)
    kq, kk = jax.random.split(key)
    q = jax.random.normal(kq, (B, N_HEAD, T, DIM), jnp.float32)
    k = jax.random.normal(kk, (B, N_KV, T, DIM), jnp.float32)

    cos_full, sin_full = rope_tables(MAX_SEQ_LEN, DIM)

    # Reference first (kernel aliases its inputs for in-place RoPE; XLA copies
    # as needed outside jit, but compute the reference up front to be explicit).
    q_ref, k_ref = reference_rope(q, k, cos_full[:T], sin_full[:T])

    fwd = jax.jit(apply_rope)
    q_out, k_out = fwd(q, k, cos_full, sin_full)
    q_out, k_out = jax.block_until_ready((q_out, k_out))

    assert q_out.shape == q.shape and k_out.shape == k.shape
    assert q_out.dtype == q.dtype and k_out.dtype == k.dtype
    assert jnp.allclose(q_out, q_ref, rtol=1e-5, atol=1e-5), "q mismatch vs reference"
    assert jnp.allclose(k_out, k_ref, rtol=1e-5, atol=1e-5), "k mismatch vs reference"

    print("KERNEL_OK")
</pallas_src>

<mosaic_0001>
module attributes {stable_mosaic.version = 11 : i64} {
  func.func @rope_kernel(%arg0: i32, %arg1: i32, %arg2: memref<1x4x16x128xf32, #tpu.memory_space<vmem>>, %arg3: memref<1x2x16x128xf32, #tpu.memory_space<vmem>>, %arg4: memref<16x128xf32, #tpu.memory_space<vmem>>, %arg5: memref<16x128xf32, #tpu.memory_space<vmem>>, %arg6: memref<1x4x16x128xf32, #tpu.memory_space<vmem>>, %arg7: memref<1x2x16x128xf32, #tpu.memory_space<vmem>>) attributes {dimension_semantics = [#tpu.dimension_semantics<parallel>, #tpu.dimension_semantics<parallel>], iteration_bounds = array<i64: 2, 1>, scalar_prefetch = 0 : i64, scratch_operands = 0 : i64, tpu.core_type = #tpu.core_type<tc>, window_params = [{transform_indices = @transform_0, window_bounds = array<i64: 1, 4, 16, 128>}, {transform_indices = @transform_1, window_bounds = array<i64: 1, 2, 16, 128>}, {transform_indices = @transform_2, window_bounds = array<i64: 16, 128>}, {transform_indices = @transform_3, window_bounds = array<i64: 16, 128>}, {transform_indices = @transform_4, window_bounds = array<i64: 1, 4, 16, 128>}, {transform_indices = @transform_5, window_bounds = array<i64: 1, 2, 16, 128>}]} {
    %c0 = arith.constant 0 : index
    %c0_0 = arith.constant 0 : index
    %0 = vector.load %arg4[%c0, %c0_0] : memref<16x128xf32, #tpu.memory_space<vmem>>, vector<16x128xf32>
    %c0_1 = arith.constant 0 : index
    %c0_2 = arith.constant 0 : index
    %1 = vector.load %arg5[%c0_1, %c0_2] : memref<16x128xf32, #tpu.memory_space<vmem>>, vector<16x128xf32>
    %c0_3 = arith.constant 0 : index
    %c0_4 = arith.constant 0 : index
    %c0_5 = arith.constant 0 : index
    %c0_6 = arith.constant 0 : index
    %2 = vector.load %arg2[%c0_3, %c0_4, %c0_5, %c0_6] : memref<1x4x16x128xf32, #tpu.memory_space<vmem>>, vector<1x4x16x128xf32>
    %3 = vector.shape_cast %2 : vector<1x4x16x128xf32> to vector<4x16x128xf32>
    %c64_i32 = arith.constant 64 : i32
    %4 = tpu.dynamic_rotate %3 by %c64_i32 dim 2 : vector<4x16x128xf32>, i32 -> vector<4x16x128xf32>
    %5 = vector.shape_cast %0 : vector<16x128xf32> to vector<1x16x128xf32>
    %6 = vector.broadcast %5 : vector<1x16x128xf32> to vector<4x16x128xf32>
    %7 = arith.mulf %3, %6 : vector<4x16x128xf32>
    %8 = vector.shape_cast %1 : vector<16x128xf32> to vector<1x16x128xf32>
    %9 = vector.broadcast %8 : vector<1x16x128xf32> to vector<4x16x128xf32>
    %10 = arith.mulf %4, %9 : vector<4x16x128xf32>
    %11 = arith.addf %7, %10 : vector<4x16x128xf32>
    %c0_7 = arith.constant 0 : index
    %c0_8 = arith.constant 0 : index
    %c0_9 = arith.constant 0 : index
    %c0_10 = arith.constant 0 : index
    %12 = vector.load %arg6[%c0_7, %c0_8, %c0_9, %c0_10] : memref<1x4x16x128xf32, #tpu.memory_space<vmem>>, vector<1x4x16x128xf32>
    %13 = vector.shape_cast %12 : vector<1x4x16x128xf32> to vector<4x16x128xf32>
    %14 = vector.shape_cast %11 : vector<4x16x128xf32> to vector<1x4x16x128xf32>
    tpu.vector_store %arg6[%c0_7, %c0_8, %c0_9, %c0_10], %14 {strides = array<i32>} : memref<1x4x16x128xf32, #tpu.memory_space<vmem>>, vector<1x4x16x128xf32>,
    %c0_11 = arith.constant 0 : index
    %c0_12 = arith.constant 0 : index
    %c0_13 = arith.constant 0 : index
    %c0_14 = arith.constant 0 : index
    %15 = vector.load %arg3[%c0_11, %c0_12, %c0_13, %c0_14] : memref<1x2x16x128xf32, #tpu.memory_space<vmem>>, vector<1x2x16x128xf32>
    %16 = vector.shape_cast %15 : vector<1x2x16x128xf32> to vector<2x16x128xf32>
    %c64_i32_15 = arith.constant 64 : i32
    %17 = tpu.dynamic_rotate %16 by %c64_i32_15 dim 2 : vector<2x16x128xf32>, i32 -> vector<2x16x128xf32>
    %18 = vector.shape_cast %0 : vector<16x128xf32> to vector<1x16x128xf32>
    %19 = vector.broadcast %18 : vector<1x16x128xf32> to vector<2x16x128xf32>
    %20 = arith.mulf %16, %19 : vector<2x16x128xf32>
    %21 = vector.shape_cast %1 : vector<16x128xf32> to vector<1x16x128xf32>
    %22 = vector.broadcast %21 : vector<1x16x128xf32> to vector<2x16x128xf32>
    %23 = arith.mulf %17, %22 : vector<2x16x128xf32>
    %24 = arith.addf %20, %23 : vector<2x16x128xf32>
    %c0_16 = arith.constant 0 : index
    %c0_17 = arith.constant 0 : index
    %c0_18 = arith.constant 0 : index
    %c0_19 = arith.constant 0 : index
    %25 = vector.load %arg7[%c0_16, %c0_17, %c0_18, %c0_19] : memref<1x2x16x128xf32, #tpu.memory_space<vmem>>, vector<1x2x16x128xf32>
    %26 = vector.shape_cast %25 : vector<1x2x16x128xf32> to vector<2x16x128xf32>
    %27 = vector.shape_cast %24 : vector<2x16x128xf32> to vector<1x2x16x128xf32>
    tpu.vector_store %arg7[%c0_16, %c0_17, %c0_18, %c0_19], %27 {strides = array<i32>} : memref<1x2x16x128xf32, #tpu.memory_space<vmem>>, vector<1x2x16x128xf32>,
    return
  }
  func.func @transform_0(%arg0: i32, %arg1: i32) -> (i32, i32, i32, i32) {
    %c0_i32 = arith.constant 0 : i32
    %c0_i32_0 = arith.constant 0 : i32
    %c0_i32_1 = arith.constant 0 : i32
    return %arg0, %c0_i32, %arg1, %c0_i32_0 : i32, i32, i32, i32
  }
  func.func @transform_1(%arg0: i32, %arg1: i32) -> (i32, i32, i32, i32) {
    %c0_i32 = arith.constant 0 : i32
    %c0_i32_0 = arith.constant 0 : i32
    %c0_i32_1 = arith.constant 0 : i32
    return %arg0, %c0_i32, %arg1, %c0_i32_0 : i32, i32, i32, i32
  }
  func.func @transform_2(%arg0: i32, %arg1: i32) -> (i32, i32) {
    %c0_i32 = arith.constant 0 : i32
    %c0_i32_0 = arith.constant 0 : i32
    return %arg1, %c0_i32 : i32, i32
  }
  func.func @transform_3(%arg0: i32, %arg1: i32) -> (i32, i32) {
    %c0_i32 = arith.constant 0 : i32
    %c0_i32_0 = arith.constant 0 : i32
    return %arg1, %c0_i32 : i32, i32
  }
  func.func @transform_4(%arg0: i32, %arg1: i32) -> (i32, i32, i32, i32) {
    %c0_i32 = arith.constant 0 : i32
    %c0_i32_0 = arith.constant 0 : i32
    %c0_i32_1 = arith.constant 0 : i32
    return %arg0, %c0_i32, %arg1, %c0_i32_0 : i32, i32, i32, i32
  }
  func.func @transform_5(%arg0: i32, %arg1: i32) -> (i32, i32, i32, i32) {
    %c0_i32 = arith.constant 0 : i32
    %c0_i32_0 = arith.constant 0 : i32
    %c0_i32_1 = arith.constant 0 : i32
    return %arg0, %c0_i32, %arg1, %c0_i32_0 : i32, i32, i32, i32
  }
}

</mosaic_0001>

<llo_original>
// kernel: apply_rope.1
$region0: #{apply_rope.1}
  #allocation0 [shape = 'u32[]', space=smem, size = 0x4, offset = 0x4, fixed_abs, tag = 'smem constant byte address 0x4 - core index']
  #allocation1 [shape = 'u32[144,128]{1,0:T(1,128)}', space=vmem, size = 0x12000, scoped, tag = 'internal scratch']
  %s0 = inlined_call_operand.hbm [shape: f32[2,4,16,128], index: 0, kind: input, shape index: {}, may-alias: {0,4}]
  %s1 = inlined_call_operand.hbm [shape: f32[2,2,16,128], index: 1, kind: input, shape index: {}, may-alias: {1,5}]
  %s2 = inlined_call_operand.vmem [shape: f32[16,128], index: 2, kind: input, shape index: {}]
  %s3 = inlined_call_operand.vmem [shape: f32[16,128], index: 3, kind: input, shape index: {}]
  %s4 = inlined_call_operand.hbm [shape: f32[2,4,16,128], index: 4, kind: output, shape index: {0}, may-alias: {0,4}]
  %s5 = inlined_call_operand.hbm [shape: f32[2,2,16,128], index: 5, kind: output, shape index: {1}, may-alias: {1,5}]
  %6 = xla_tuple %s4, %s5
  %s7 = sld [smem:[#allocation0]]
  $region65: #{apply_rope.1} parent=0
    _
  %s9 = ssub.s32 1, %s7
  %s10 = scalar_select 0, %s9, %s7
  $region1: #{apply_rope.1} parent=0
    #allocation2 [shape = 'u8[65536]{0}', space=vmem, size = 0x10000, scoped, tag = 'input window, operand 0']
    #allocation3 [shape = 's32[2]{0}', space=sflag, size = 0x8, scoped, tag = 'scoped memory for apply_rope.1']
    #allocation4 [shape = 's32[2]{0}', space=sflag, size = 0x8, scoped, tag = 'scoped memory for apply_rope.1']
    #allocation5 [shape = 'u8[32768]{0}', space=vmem, size = 0x8000, scoped, tag = 'input window, operand 1']
    #allocation6 [shape = 's32[2]{0}', space=sflag, size = 0x8, scoped, tag = 'scoped memory for apply_rope.1']
    #allocation7 [shape = 'u8[65536]{0}', space=vmem, size = 0x10000, scoped, tag = 'output window, operand 0']
    #allocation8 [shape = 'u8[32768]{0}', space=vmem, size = 0x8000, scoped, tag = 'output window, operand 1']
    #allocation9 [shape = 's32[2]{0}', space=sflag, size = 0x8, scoped, tag = 'scoped memory for apply_rope.1']
    %11 = vsyncpa [#allocation3], 0
    %s12 = scalar_lea.sflag [#allocation3], 1
    %13 = vsyncpa %s12, 0
    %14 = vsyncpa [#allocation6], 0
    %s15 = scalar_lea.sflag [#allocation6], 1
    %16 = vsyncpa %s15, 0
    %17 = vsyncpa [#allocation4], 0
    %s18 = scalar_lea.sflag [#allocation4], 1
    %19 = vsyncpa %s18, 0
    %20 = vsyncpa [#allocation9], 0
    %s21 = scalar_lea.sflag [#allocation9], 1
    %22 = vsyncpa %s21, 0
    loop: start=0, step=1, limit=4
    $region2: #{apply_rope.1} parent=1 // loop_pre_header
      _
    $region3: #{apply_rope.1} parent=1 // loop_header
      %s24 = sphi 0, %s28
      %p25 = scmp.ge.s32.totalorder %s24, 4
      %s31 = sphi 0, %s43
      %s32 = sphi 0, %s39
      %s33 = sphi 0, %s31
      %s34 = sphi 0, %s32
      %s35 = sphi 0, %s33
      %s36 = sphi 0, %s34
      %s48 = sphi 0, %s50
      %s51 = sphi 0, %s48
      %s52 = sphi 0, %s51
      %s68 = sphi 0, %s52
      %s76 = sphi 0, %s78
      %s79 = sphi 0, %s76
      %s80 = sphi 0, %s79
      %s96 = sphi 0, %s80
      %s102 = sphi 0, %s104
      %s105 = sphi 0, %s102
      %s106 = sphi 0, %s105
      %s122 = sphi 0, %s106
      %s128 = sphi 0, %s130
      %s131 = sphi 0, %s128
      %s132 = sphi 0, %s131
      %s148 = sphi 0, %s132
      %s156 = sphi 0, %s158
      %s159 = sphi 0, %s156
      %s160 = sphi 0, %s159
      %s176 = sphi 0, %s160
      %s184 = sphi 0, %s186
      %s187 = sphi 0, %s184
      %s188 = sphi 0, %s187
      %s204 = sphi 0, %s188
    $region4: #{apply_rope.1} parent=1 // loop_header_branch
      %27 = sbr.rel (%p25) target = $region8
    $region5: #{apply_rope.1} parent=1 // loop_body
      %s29 = ssub.s32 %s24, 1
      %s30 = ssub.s32 %s24, 2
      %s37 = sadd.s32 1, %s32
      %p38 = scmp.ge.s32.totalorder %s37, 1
      %s39 = scalar_select %p38, 0, %s37
      %s40 = sadd.s32 1, %s31
      %s41 = scalar_select %p38, %s40, %s31
      %p42 = scmp.ge.s32.totalorder %s41, 2
      %s43 = scalar_select %p42, 0, %s41
      %s44 = ssub.s32 %s31, %s43
      %s45 = ssub.s32 %s32, %s39
      %s46 = sor.u32 %s44, %s45
      %p47 = scmp.eq.s32.totalorder %s46, 0
      %s49 = sadd.s32 %s48, 1
      %s50 = scalar_select %p47, %s48, %s49
      %p53 = pneg %p47
      %p54 = scmp.eq.s32.totalorder %s24, 1
      %p55 = por %p53, %p54
      %p56 = scmp.ne.s32.totalorder %s48, %s51
      %p57 = scmp.eq.s32.totalorder %s24, 0
      %p58 = por %p56, %p57
      %p59 = scmp.ne.s32.totalorder %s48, %s51
      %p60 = scmp.eq.s32.totalorder %s29, 1
      %p61 = por %p59, %p60
      %p62 = scmp.ne.s32.totalorder %s51, %s52
      %p63 = scmp.eq.s32.totalorder %s29, 0
      %p64 = por %p62, %p63
      %p65 = scmp.ne.s32.totalorder %s51, %s52
      %p66 = scmp.eq.s32.totalorder %s30, 1
      %p67 = por %p65, %p66
      %p69 = scmp.ne.s32.totalorder %s52, %s68
      %p70 = scmp.eq.s32.totalorder %s30, 0
      %p71 = por %p69, %p70
      %s72 = ssub.s32 %s31, %s43
      %s73 = ssub.s32 %s32, %s39
      %s74 = sor.u32 %s72, %s73
      %p75 = scmp.eq.s32.totalorder %s74, 0
      %s77 = sadd.s32 %s76, 1
      %s78 = scalar_select %p75, %s76, %s77
      %p81 = pneg %p75
      %p82 = scmp.eq.s32.totalorder %s24, 1
      %p83 = por %p81, %p82
      %p84 = scmp.ne.s32.totalorder %s76, %s79
      %p85 = scmp.eq.s32.totalorder %s24, 0
      %p86 = por %p84, %p85
      %p87 = scmp.ne.s32.totalorder %s76, %s79
      %p88 = scmp.eq.s32.totalorder %s29, 1
      %p89 = por %p87, %p88
      %p90 = scmp.ne.s32.totalorder %s79, %s80
      %p91 = scmp.eq.s32.totalorder %s29, 0
      %p92 = por %p90, %p91
      %p93 = scmp.ne.s32.totalorder %s79, %s80
      %p94 = scmp.eq.s32.totalorder %s30, 1
      %p95 = por %p93, %p94
      %p97 = scmp.ne.s32.totalorder %s80, %s96
      %p98 = scmp.eq.s32.totalorder %s30, 0
      %p99 = por %p97, %p98
      %s100 = ssub.s32 %s32, %s39
      %p101 = scmp.eq.s32.totalorder %s100, 0
      %s103 = sadd.s32 %s102, 1
      %s104 = scalar_select %p101, %s102, %s103
      %p107 = pneg %p101
      %p108 = scmp.eq.s32.totalorder %s24, 1
      %p109 = por %p107, %p108
      %p110 = scmp.ne.s32.totalorder %s102, %s105
      %p111 = scmp.eq.s32.totalorder %s24, 0
      %p112 = por %p110, %p111
      %p113 = scmp.ne.s32.totalorder %s102, %s105
      %p114 = scmp.eq.s32.totalorder %s29, 1
      %p115 = por %p113, %p114
      %p116 = scmp.ne.s32.totalorder %s105, %s106
      %p117 = scmp.eq.s32.totalorder %s29, 0
      %p118 = por %p116, %p117
      %p119 = scmp.ne.s32.totalorder %s105, %s106
      %p120 = scmp.eq.s32.totalorder %s30, 1
      %p121 = por %p119, %p120
      %p123 = scmp.ne.s32.totalorder %s106, %s122
      %p124 = scmp.eq.s32.totalorder %s30, 0
      %p125 = por %p123, %p124
      %s126 = ssub.s32 %s32, %s39
      %p127 = scmp.eq.s32.totalorder %s126, 0
      %s129 = sadd.s32 %s128, 1
      %s130 = scalar_select %p127, %s128, %s129
      %p133 = pneg %p127
      %p134 = scmp.eq.s32.totalorder %s24, 1
      %p135 = por %p133, %p134
      %p136 = scmp.ne.s32.totalorder %s128, %s131
      %p137 = scmp.eq.s32.totalorder %s24, 0
      %p138 = por %p136, %p137
      %p139 = scmp.ne.s32.totalorder %s128, %s131
      %p140 = scmp.eq.s32.totalorder %s29, 1
      %p141 = por %p139, %p140
      %p142 = scmp.ne.s32.totalorder %s131, %s132
      %p143 = scmp.eq.s32.totalorder %s29, 0
      %p144 = por %p142, %p143
      %p145 = scmp.ne.s32.totalorder %s131, %s132
      %p146 = scmp.eq.s32.totalorder %s30, 1
      %p147 = por %p145, %p146
      %p149 = scmp.ne.s32.totalorder %s132, %s148
      %p150 = scmp.eq.s32.totalorder %s30, 0
      %p151 = por %p149, %p150
      %s152 = ssub.s32 %s31, %s43
      %s153 = ssub.s32 %s32, %s39
      %s154 = sor.u32 %s152, %s153
      %p155 = scmp.eq.s32.totalorder %s154, 0
      %s157 = sadd.s32 %s156, 1
      %s158 = scalar_select %p155, %s156, %s157
      %p161 = pneg %p155
      %p162 = scmp.eq.s32.totalorder %s24, 1
      %p163 = por %p161, %p162
      %p164 = scmp.ne.s32.totalorder %s156, %s159
      %p165 = scmp.eq.s32.totalorder %s24, 0
      %p166 = por %p164, %p165
      %p167 = scmp.ne.s32.totalorder %s156, %s159
      %p168 = scmp.eq.s32.totalorder %s29, 1
      %p169 = por %p167, %p168
      %p170 = scmp.ne.s32.totalorder %s159, %s160
      %p171 = scmp.eq.s32.totalorder %s29, 0
      %p172 = por %p170, %p171
      %p173 = scmp.ne.s32.totalorder %s159, %s160
      %p174 = scmp.eq.s32.totalorder %s30, 1
      %p175 = por %p173, %p174
      %p177 = scmp.ne.s32.totalorder %s160, %s176
      %p178 = scmp.eq.s32.totalorder %s30, 0
      %p179 = por %p177, %p178
      %s180 = ssub.s32 %s31, %s43
      %s181 = ssub.s32 %s32, %s39
      %s182 = sor.u32 %s180, %s181
      %p183 = scmp.eq.s32.totalorder %s182, 0
      %s185 = sadd.s32 %s184, 1
      %s186 = scalar_select %p183, %s184, %s185
      %p189 = pneg %p183
      %p190 = scmp.eq.s32.totalorder %s24, 1
      %p191 = por %p189, %p190
      %p192 = scmp.ne.s32.totalorder %s184, %s187
      %p193 = scmp.eq.s32.totalorder %s24, 0
      %p194 = por %p192, %p193
      %p195 = scmp.ne.s32.totalorder %s184, %s187
      %p196 = scmp.eq.s32.totalorder %s29, 1
      %p197 = por %p195, %p196
      %p198 = scmp.ne.s32.totalorder %s187, %s188
      %p199 = scmp.eq.s32.totalorder %s29, 0
      %p200 = por %p198, %p199
      %p201 = scmp.ne.s32.totalorder %s187, %s188
      %p202 = scmp.eq.s32.totalorder %s30, 1
      %p203 = por %p201, %p202
      %p205 = scmp.ne.s32.totalorder %s188, %s204
      %p206 = scmp.eq.s32.totalorder %s30, 0
      %p207 = por %p205, %p206
      %p208 = scmp.le.s32.totalorder 1, %s24
      %p209 = scmp.lt.s32.totalorder %s24, 3
      %p210 = pnand %p208, %p209
      %p211 = pneg %p210
      // Predicated region
      $region9: #{apply_rope.1} parent=5 // pred_check
        _
      $region10: #{apply_rope.1} parent=5 // pred_check_branch
        %213 = sbr.rel (%p210) target = $region12
      $region11: #{apply_rope.1} parent=5 // pred_region
        %s214 = ssub.s32 %s24, 1
        // Predicated region
        $region13: #{apply_rope.1} parent=11 // pred_check
          %p215 = pneg %p118
        $region14: #{apply_rope.1} parent=11 // pred_check_branch
          %217 = sbr.rel (%p215) target = $region16
        $region15: #{apply_rope.1} parent=11 // pred_region
          %s218 = smul.u32 2, %s34
          %p219 = scmp.lt.s32.totalorder %s218, 1
          %s220 = scalar_select %p219, %s218, 1
          %s221 = smul.addr %s220, 8
          %s222 = scalar_lea.vmem %s2, %s221
          %s223 = smul.u32 2, %s34
        $region16: #{apply_rope.1} parent=11 // pred_fallthru
          _
        // Predicated region
        $region17: #{apply_rope.1} parent=11 // pred_check
          %p224 = pneg %p144
        $region18: #{apply_rope.1} parent=11 // pred_check_branch
          %226 = sbr.rel (%p224) target = $region20
        $region19: #{apply_rope.1} parent=11 // pred_region
          %s227 = smul.u32 2, %s34
          %p228 = scmp.lt.s32.totalorder %s227, 1
          %s229 = scalar_select %p228, %s227, 1
          %s230 = smul.addr %s229, 8
          %s231 = scalar_lea.vmem %s3, %s230
          %s232 = smul.u32 2, %s34
        $region20: #{apply_rope.1} parent=11 // pred_fallthru
          _
      $region12: #{apply_rope.1} parent=5 // pred_fallthru
        _
      %p233 = scmp.lt.s32.totalorder %s24, 2
      // Predicated region
      $region21: #{apply_rope.1} parent=5 // pred_check
        %p234 = pneg %p233
      $region22: #{apply_rope.1} parent=5 // pred_check_branch
        %236 = sbr.rel (%p234) target = $region24
      $region23: #{apply_rope.1} parent=5 // pred_region
        // Predicated region
        $region25: #{apply_rope.1} parent=23 // pred_check
          %p237 = pneg %p58
        $region26: #{apply_rope.1} parent=23 // pred_check_branch
          %239 = sbr.rel (%p237) target = $region28
        $region27: #{apply_rope.1} parent=23 // pred_region
          %s240 = sand.u32 %s48, 1
          %s241 = scalar_lea.sflag [#allocation3], %s240
          %s242 = sand.u32 %s48, 1
          %s243 = smul.addr %s242, 64
          %s244 = scalar_lea.vmem [#allocation2], %s243
          %s245 = smul.u32 2, %s32
          %s247 = ssub.s32 1024, 1024
          %248 = vsyncadd %s241, %s247
          %s249 = smul.addr %s31, 8
          %s250 = sadd.s32 %s245, %s249
          %s251 = smul.addr %s250, 128
          %s252 = scalar_lea.hbm %s0, %s251
          %s253 = sshll.u32 %s244, 4
          %s254 = int_to_ptr.vmem [resolvable:$true] %s253
          %259 = dma.hbm_to_vmem [thread:$0]  %s252, 1024, %s254, %s241, 128, 128, 8
        $region28: #{apply_rope.1} parent=23 // pred_fallthru
          _
        // Predicated region
        $region29: #{apply_rope.1} parent=23 // pred_check
          %p260 = pneg %p86
        $region30: #{apply_rope.1} parent=23 // pred_check_branch
          %262 = sbr.rel (%p260) target = $region32
        $region31: #{apply_rope.1} parent=23 // pred_region
          %s263 = sand.u32 %s76, 1
          %s264 = scalar_lea.sflag [#allocation6], %s263
          %s265 = sand.u32 %s76, 1
          %s266 = smul.addr %s265, 32
          %s267 = scalar_lea.vmem [#allocation5], %s266
          %s268 = smul.u32 2, %s32
          %s270 = ssub.s32 512, 512
          %271 = vsyncadd %s264, %s270
          %s272 = smul.addr %s31, 4
          %s273 = sadd.s32 %s268, %s272
          %s274 = smul.addr %s273, 128
          %s275 = scalar_lea.hbm %s1, %s274
          %s276 = sshll.u32 %s267, 4
          %s277 = int_to_ptr.vmem [resolvable:$true] %s276
          %282 = dma.hbm_to_vmem [thread:$0]  %s275, 512, %s277, %s264, 128, 128, 8
        $region32: #{apply_rope.1} parent=23 // pred_fallthru
          _
      $region24: #{apply_rope.1} parent=5 // pred_fallthru
        _
      %p283 = scmp.le.s32.totalorder 1, %s24
      %p284 = scmp.lt.s32.totalorder %s24, 3
      %p285 = pnand %p283, %p284
      %p286 = pneg %p285
      // Predicated region
      $region33: #{apply_rope.1} parent=5 // pred_check
        _
      $region34: #{apply_rope.1} parent=5 // pred_check_branch
        %288 = sbr.rel (%p285) target = $region36
      $region35: #{apply_rope.1} parent=5 // pred_region
        %s289 = ssub.s32 %s24, 1
        %s290 = sand.u32 %s51, 1
        %s291 = scalar_lea.sflag [#allocation3], %s290
        %s292 = sand.u32 %s51, 1
        %s293 = smul.addr %s292, 64
        %s294 = scalar_lea.vmem [#allocation2], %s293
        // Predicated region
        $region37: #{apply_rope.1} parent=35 // pred_check
          %p295 = pneg %p64
        $region38: #{apply_rope.1} parent=35 // pred_check_branch
          %297 = sbr.rel (%p295) target = $region40
        $region39: #{apply_rope.1} parent=35 // pred_region
          %298 = dma.done %s291, 1024
        $region40: #{apply_rope.1} parent=35 // pred_fallthru
          _
        %s299 = sand.u32 %s79, 1
        %s300 = scalar_lea.sflag [#allocation6], %s299
        %s301 = sand.u32 %s79, 1
        %s302 = smul.addr %s301, 32
        %s303 = scalar_lea.vmem [#allocation5], %s302
        // Predicated region
        $region41: #{apply_rope.1} parent=35 // pred_check
          %p304 = pneg %p92
        $region42: #{apply_rope.1} parent=35 // pred_check_branch
          %306 = sbr.rel (%p304) target = $region44
        $region43: #{apply_rope.1} parent=35 // pred_region
          %307 = dma.done %s300, 512
        $region44: #{apply_rope.1} parent=35 // pred_fallthru
          _
        %s308 = sand.u32 %s51, 1
        %s309 = scalar_lea.sflag [#allocation3], %s308
        %s310 = sand.u32 %s51, 1
        %s311 = smul.addr %s310, 64
        %s312 = scalar_lea.vmem [#allocation2], %s311
        %p313 = pneg %p64
        %p314 = pneg %p61
        %s315 = sand.u32 %s79, 1
        %s316 = scalar_lea.sflag [#allocation6], %s315
        %s317 = sand.u32 %s79, 1
        %s318 = smul.addr %s317, 32
        %s319 = scalar_lea.vmem [#allocation5], %s318
        %p320 = pneg %p92
        %p321 = pneg %p89
        %s322 = smul.u32 2, %s34
        %p323 = scmp.lt.s32.totalorder %s322, 1
        %s324 = scalar_select %p323, %s322, 1
        %s325 = smul.addr %s324, 8
        %s326 = scalar_lea.vmem %s2, %s325
        %p327 = pneg %p118
        %p328 = pneg %p115
        %s329 = smul.u32 2, %s34
        %p330 = scmp.lt.s32.totalorder %s329, 1
        %s331 = scalar_select %p330, %s329, 1
        %s332 = smul.addr %s331, 8
        %s333 = scalar_lea.vmem %s3, %s332
        %p334 = pneg %p144
        %p335 = pneg %p141
        %p336 = pneg %p172
        %p337 = pneg %p169
        %s338 = sand.u32 %s159, 1
        %s339 = scalar_lea.sflag [#allocation4], %s338
        %s340 = sand.u32 %s159, 1
        %s341 = smul.addr %s340, 64
        %s342 = scalar_lea.vmem [#allocation7], %s341
        %p343 = pneg %p200
        %p344 = pneg %p197
        %s345 = sand.u32 %s187, 1
        %s346 = scalar_lea.sflag [#allocation9], %s345
        %s347 = sand.u32 %s187, 1
        %s348 = smul.addr %s347, 32
        %s349 = scalar_lea.vmem [#allocation8], %s348
        %s350 = smul.u32 2, %s34
        %s351 = smul.u32 2, %s34
        %s352 = smul.u32 2, %s34
        %p353 = scmp.lt.s32.totalorder %s352, 1
        %s354 = scalar_select %p353, %s352, 1
        %s355 = smul.addr %s354, 8
        %s356 = scalar_lea.vmem %s2, %s355
        %s357 = smul.u32 2, %s34
        %s358 = smul.u32 2, %s34
        %p359 = scmp.lt.s32.totalorder %s358, 1
        %s360 = scalar_select %p359, %s358, 1
        %s361 = smul.addr %s360, 8
        %s362 = scalar_lea.vmem %s3, %s361
        %s363 = smul.u32 2, %s34
        %s364 = smul.u32 2, %s34
        %s365 = smul.u32 2, %s34
        %v366 = vld [vmem:[%s356] sm:$0xff]
        %v367 = vld [vmem:[%s356 + $0x8] sm:$0xff]
        %v368 = vld [vmem:[%s362] sm:$0xff]
        %v369 = vld [vmem:[%s362 + $0x8] sm:$0xff]
        %v370 = vld [vmem:[%s294] sm:$0xff]
        %v371 = vld [vmem:[%s294 + $0x8] sm:$0xff]
        %v372 = vld [vmem:[%s294 + $0x10] sm:$0xff]
        %v373 = vld [vmem:[%s294 + $0x18] sm:$0xff]
        %v374 = vld [vmem:[%s294 + $0x20] sm:$0xff]
        %v375 = vld [vmem:[%s294 + $0x28] sm:$0xff]
        %v376 = vld [vmem:[%s294 + $0x30] sm:$0xff]
        %v377 = vld [vmem:[%s294 + $0x38] sm:$0xff]
        %378 = vrot.lane.b32.xlu0 %v370, 64
        %v379 = vpop.permute.xlu0 %378
        %380 = vrot.lane.b32.xlu0 %v371, 64
        %v381 = vpop.permute.xlu0 %380
        %382 = vrot.lane.b32.xlu0 %v372, 64
        %v383 = vpop.permute.xlu0 %382
        %384 = vrot.lane.b32.xlu0 %v373, 64
        %v385 = vpop.permute.xlu0 %384
        %386 = vrot.lane.b32.xlu0 %v374, 64
        %v387 = vpop.permute.xlu0 %386
        %388 = vrot.lane.b32.xlu0 %v375, 64
        %v389 = vpop.permute.xlu0 %388
        %390 = vrot.lane.b32.xlu0 %v376, 64
        %v391 = vpop.permute.xlu0 %390
        %392 = vrot.lane.b32.xlu0 %v377, 64
        %v393 = vpop.permute.xlu0 %392
        %v394 = vmul.f32 %v370, %v366
        %v395 = vmul.f32 %v371, %v367
        %v396 = vmul.f32 %v372, %v366
        %v397 = vmul.f32 %v373, %v367
        %v398 = vmul.f32 %v374, %v366
        %v399 = vmul.f32 %v375, %v367
        %v400 = vmul.f32 %v376, %v366
        %v401 = vmul.f32 %v377, %v367
        %v402 = vmul.f32 %v379, %v368
        %v403 = vmul.f32 %v381, %v369
        %v404 = vmul.f32 %v383, %v368
        %v405 = vmul.f32 %v385, %v369
        %v406 = vmul.f32 %v387, %v368
        %v407 = vmul.f32 %v389, %v369
        %v408 = vmul.f32 %v391, %v368
        %v409 = vmul.f32 %v393, %v369
        %v410 = vadd.f32 %v394, %v402
        %v411 = vadd.f32 %v395, %v403
        %v412 = vadd.f32 %v396, %v404
        %v413 = vadd.f32 %v397, %v405
        %v414 = vadd.f32 %v398, %v406
        %v415 = vadd.f32 %v399, %v407
        %v416 = vadd.f32 %v400, %v408
        %v417 = vadd.f32 %v401, %v409
        %418 = vst [vmem:[%s342] sm:$0xff] %v410
        %419 = vst [vmem:[%s342 + $0x8] sm:$0xff] %v411
        %420 = vst [vmem:[%s342 + $0x10] sm:$0xff] %v412
        %421 = vst [vmem:[%s342 + $0x18] sm:$0xff] %v413
        %422 = vst [vmem:[%s342 + $0x20] sm:$0xff] %v414
        %423 = vst [vmem:[%s342 + $0x28] sm:$0xff] %v415
        %424 = vst [vmem:[%s342 + $0x30] sm:$0xff] %v416
        %425 = vst [vmem:[%s342 + $0x38] sm:$0xff] %v417
        %v426 = vld [vmem:[%s303] sm:$0xff]
        %v427 = vld [vmem:[%s303 + $0x8] sm:$0xff]
        %v428 = vld [vmem:[%s303 + $0x10] sm:$0xff]
        %v429 = vld [vmem:[%s303 + $0x18] sm:$0xff]
        %430 = vrot.lane.b32.xlu0 %v426, 64
        %v431 = vpop.permute.xlu0 %430
        %432 = vrot.lane.b32.xlu0 %v427, 64
        %v433 = vpop.permute.xlu0 %432
        %434 = vrot.lane.b32.xlu0 %v428, 64
        %v435 = vpop.permute.xlu0 %434
        %436 = vrot.lane.b32.xlu0 %v429, 64
        %v437 = vpop.permute.xlu0 %436
        %v438 = vmul.f32 %v426, %v366
        %v439 = vmul.f32 %v427, %v367
        %v440 = vmul.f32 %v428, %v366
        %v441 = vmul.f32 %v429, %v367
        %v442 = vmul.f32 %v431, %v368
        %v443 = vmul.f32 %v433, %v369
        %v444 = vmul.f32 %v435, %v368
        %v445 = vmul.f32 %v437, %v369
        %v446 = vadd.f32 %v438, %v442
        %v447 = vadd.f32 %v439, %v443
        %v448 = vadd.f32 %v440, %v444
        %v449 = vadd.f32 %v441, %v445
        %450 = vst [vmem:[%s349] sm:$0xff] %v446
        %451 = vst [vmem:[%s349 + $0x8] sm:$0xff] %v447
        %452 = vst [vmem:[%s349 + $0x10] sm:$0xff] %v448
        %453 = vst [vmem:[%s349 + $0x18] sm:$0xff] %v449
        %s454 = sand.u32 %s159, 1
        %s455 = scalar_lea.sflag [#allocation4], %s454
        %s456 = sand.u32 %s159, 1
        %s457 = smul.addr %s456, 64
        %s458 = scalar_lea.vmem [#allocation7], %s457
        %s459 = sand.u32 %s187, 1
        %s460 = scalar_lea.sflag [#allocation9], %s459
        %s461 = sand.u32 %s187, 1
        %s462 = smul.addr %s461, 32
        %s463 = scalar_lea.vmem [#allocation8], %s462
        // Predicated region
        $region45: #{apply_rope.1} parent=35 // pred_check
          %p464 = pneg %p169
        $region46: #{apply_rope.1} parent=35 // pred_check_branch
          %466 = sbr.rel (%p464) target = $region48
        $region47: #{apply_rope.1} parent=35 // pred_region
          %s467 = smul.u32 2, %s34
          %s469 = ssub.s32 1024, 1024
          %470 = vsyncadd %s455, %s469
          %s471 = smul.addr %s33, 8
          %s472 = sadd.s32 %s467, %s471
          %s473 = smul.addr %s472, 128
          %s474 = scalar_lea.hbm %s4, %s473
          %s475 = sshll.u32 %s458, 4
          %s476 = int_to_ptr.vmem [resolvable:$true] %s475
          %481 = dma.vmem_to_hbm [thread:$0]  %s476, 1024, %s474, %s455, 128, 128, 8
        $region48: #{apply_rope.1} parent=35 // pred_fallthru
          _
        // Predicated region
        $region49: #{apply_rope.1} parent=35 // pred_check
          %p482 = pneg %p197
        $region50: #{apply_rope.1} parent=35 // pred_check_branch
          %484 = sbr.rel (%p482) target = $region52
        $region51: #{apply_rope.1} parent=35 // pred_region
          %s485 = smul.u32 2, %s34
          %s487 = ssub.s32 512, 512
          %488 = vsyncadd %s460, %s487
          %s489 = smul.addr %s33, 4
          %s490 = sadd.s32 %s485, %s489
          %s491 = smul.addr %s490, 128
          %s492 = scalar_lea.hbm %s5, %s491
          %s493 = sshll.u32 %s463, 4
          %s494 = int_to_ptr.vmem [resolvable:$true] %s493
          %499 = dma.vmem_to_hbm [thread:$0]  %s494, 512, %s492, %s460, 128, 128, 8
        $region52: #{apply_rope.1} parent=35 // pred_fallthru
          _
      $region36: #{apply_rope.1} parent=5 // pred_fallthru
        _
      %p500 = scmp.le.s32.totalorder 2, %s24
      // Predicated region
      $region53: #{apply_rope.1} parent=5 // pred_check
        %p501 = pneg %p500
      $region54: #{apply_rope.1} parent=5 // pred_check_branch
        %503 = sbr.rel (%p501) target = $region56
      $region55: #{apply_rope.1} parent=5 // pred_region
        %s504 = ssub.s32 %s24, 2
        // Predicated region
        $region57: #{apply_rope.1} parent=55 // pred_check
          %p505 = pneg %p175
        $region58: #{apply_rope.1} parent=55 // pred_check_branch
          %507 = sbr.rel (%p505) target = $region60
        $region59: #{apply_rope.1} parent=55 // pred_region
          %s508 = sand.u32 %s160, 1
          %s509 = scalar_lea.sflag [#allocation4], %s508
          %s510 = sand.u32 %s160, 1
          %s511 = smul.addr %s510, 64
          %s512 = scalar_lea.vmem [#allocation7], %s511
          %513 = dma.done %s509, 1024
        $region60: #{apply_rope.1} parent=55 // pred_fallthru
          _
        // Predicated region
        $region61: #{apply_rope.1} parent=55 // pred_check
          %p514 = pneg %p203
        $region62: #{apply_rope.1} parent=55 // pred_check_branch
          %516 = sbr.rel (%p514) target = $region64
        $region63: #{apply_rope.1} parent=55 // pred_region
          %s517 = sand.u32 %s188, 1
          %s518 = scalar_lea.sflag [#allocation9], %s517
          %s519 = sand.u32 %s188, 1
          %s520 = smul.addr %s519, 32
          %s521 = scalar_lea.vmem [#allocation8], %s520
          %522 = dma.done %s518, 512
        $region64: #{apply_rope.1} parent=55 // pred_fallthru
          _
      $region56: #{apply_rope.1} parent=5 // pred_fallthru
        _
    $region6: #{apply_rope.1} parent=1 // loop_footer
      %s28 = sadd.s32 1, %s24
    $region7: #{apply_rope.1} parent=1 // loop_footer_branch
      %23 = sbr.rel target = $region3
    $region8: #{apply_rope.1} parent=1 // loop_exit
      _
    %523 = vsyncpa [#allocation3], 1
    %s524 = scalar_lea.sflag [#allocation3], 1
    %525 = vsyncpa %s524, 1
    %526 = vsyncpa [#allocation6], 1
    %s527 = scalar_lea.sflag [#allocation6], 1
    %528 = vsyncpa %s527, 1
    %529 = vsyncpa [#allocation4], 1
    %s530 = scalar_lea.sflag [#allocation4], 1
    %531 = vsyncpa %s530, 1
    %532 = vsyncpa [#allocation9], 1
    %s533 = scalar_lea.sflag [#allocation9], 1
    %534 = vsyncpa %s533, 1

</llo_original>
